<compile_context>
chip_gen: v5e
topology: v5e:2x2
jax: 0.10.0
libtpu: 0.0.40
codegen_flags: <defaults>
</compile_context>

<pallas_src>
import functools

import jax
import jax.numpy as jnp
from jax.experimental import pallas as pl
from jax.experimental.pallas import tpu as pltpu


def _mlp_kernel(x_ref, w1_ref, b1_ref, w2_ref, b2_ref, o_ref, *, approximate_gelu):
    # fc1: (tm, C) @ (C, H) on the MXU, f32 accumulation.  If x is already
    # bf16 the astype is a no-op (no extra cast work).
    x = x_ref[...].astype(w1_ref.dtype)
    h = jnp.dot(x, w1_ref[...], preferred_element_type=jnp.float32)
    # Bias + GELU in f32.  approximate=True -> tanh form (EUP transcendental),
    # approximate=False -> exact erf (torch.nn.GELU default).
    h = h + b1_ref[...]
    h = jax.nn.gelu(h, approximate=approximate_gelu)
    # fc2: (tm, H) @ (H, O), f32 accumulation.
    o = jnp.dot(h.astype(w2_ref.dtype), w2_ref[...],
                preferred_element_type=jnp.float32)
    o = o + b2_ref[...]
    # Dropout p=0.0 in the reference module -> identity.
    o_ref[...] = o.astype(o_ref.dtype)


def _derive_vmem_limit(tm, C, H, O, *, x_bytes, w_bytes, out_bytes):
    """Shape-derived scoped-VMEM budget: single-buffered resident weights +
    double-buffered x/out row tiles + f32 hidden intermediate, plus slack for
    Mosaic internal scratch.  Clamped to [32 MiB, 64 MiB] so the request is
    valid on v7x (64 MiB physical VMEM) as well as v5e/v6e (128 MiB)."""
    weights = (C * H + H * O) * w_bytes + (H + O) * 4
    act_tiles = 2 * tm * C * x_bytes + 2 * tm * O * out_bytes
    intermediates = tm * H * 4 + tm * max(H, O) * 4
    need = weights + act_tiles + intermediates
    return int(max(32 << 20, min(need * 5 // 4 + (4 << 20), 64 << 20)))


def mlp_pallas(x, w1, b1, w2, b2, *, tm=512, use_bf16_matmul=True,
               approximate_gelu=True, vmem_limit_bytes=None):
    """ViT Mlp forward.  x: (B, N, C). w1: (C, H), b1: (H,), w2: (H, O), b2: (O,)."""
    B, N, C = x.shape
    H = w1.shape[1]
    O = w2.shape[1]
    rows = B * N

    # Row tile: large (multiple of 256 by default -> full-width MXU passes on
    # v6e/v7x) for real shapes, shrunk to a multiple of 8 sublanes for tiny
    # inputs.  No wrapper padding: the ragged last block is handled by Pallas.
    tm_eff = max(8, min(tm, ((rows + 7) // 8) * 8))
    grid = (pl.cdiv(rows, tm_eff),)

    x2 = x.reshape(rows, C)

    # Weights stored bf16 (MXU-native), biases kept f32 for the VPU add.
    mm_dtype = jnp.bfloat16 if use_bf16_matmul else x.dtype
    w1c = w1.astype(mm_dtype)
    w2c = w2.astype(mm_dtype)
    b1_2 = b1.reshape(1, H).astype(jnp.float32)
    b2_2 = b2.reshape(1, O).astype(jnp.float32)

    if vmem_limit_bytes is None:
        vmem_limit_bytes = _derive_vmem_limit(
            tm_eff, C, H, O,
            x_bytes=x.dtype.itemsize,
            w_bytes=jnp.dtype(mm_dtype).itemsize,
            out_bytes=x.dtype.itemsize)

    kernel = functools.partial(_mlp_kernel, approximate_gelu=approximate_gelu)

    def make_call(single_buffer_weights):
        if single_buffer_weights:
            # Resident operands (constant index_map): one VMEM buffer each.
            def resident(shape):
                return pl.BlockSpec(shape, lambda i: (0, 0),
                                    pipeline_mode=pl.Buffered(1))
        else:
            def resident(shape):
                return pl.BlockSpec(shape, lambda i: (0, 0))
        return pl.pallas_call(
            kernel,
            out_shape=jax.ShapeDtypeStruct((rows, O), x.dtype),
            grid_spec=pltpu.PrefetchScalarGridSpec(
                num_scalar_prefetch=0,
                grid=grid,
                in_specs=[
                    pl.BlockSpec((tm_eff, C), lambda i: (i, 0)),  # x row-tile
                    resident((C, H)),                             # w1 (resident)
                    resident((1, H)),                             # b1
                    resident((H, O)),                             # w2 (resident)
                    resident((1, O)),                             # b2
                ],
                out_specs=pl.BlockSpec((tm_eff, O), lambda i: (i, 0)),
            ),
            compiler_params=pltpu.CompilerParams(
                dimension_semantics=("parallel",),
                vmem_limit_bytes=vmem_limit_bytes),
        )

    # TODO(synk): for very large C/H (ViT-H/giant, beyond the resident-weight
    # VMEM budget on v7x's 64 MiB) add a second "arbitrary" grid axis tiling H:
    # fc1 produces an H-slab per step and fc2 accumulates into an f32 output
    # scratch via pl.when init/finalize (keeps both matmuls full-K on the MXU).
    try:
        out2 = make_call(True)(x2, w1c, b1_2, w2c, b2_2)
    except Exception:
        # Fallback for jax versions where pipeline_mode=pl.Buffered(1) is not
        # accepted on a top-level pallas_call BlockSpec: identical kernel with
        # default (double) buffering of the resident weights.
        out2 = make_call(False)(x2, w1c, b1_2, w2c, b2_2)

    return out2.reshape(B, N, O)


def mlp_reference(x, w1, b1, w2, b2, *, approximate_gelu):
    h = jnp.einsum("bnc,ch->bnh", x, w1) + b1
    h = jax.nn.gelu(h, approximate=approximate_gelu)
    return jnp.einsum("bnh,ho->bno", h, w2) + b2


def _run_case(key, B, N, C, H, O, approximate_gelu):
    kx, k1, k2, k3, k4 = jax.random.split(key, 5)
    x = jax.random.normal(kx, (B, N, C), dtype=jnp.float32)
    lim1 = 1.0 / (C ** 0.5)
    lim2 = 1.0 / (H ** 0.5)
    w1 = jax.random.uniform(k1, (C, H), jnp.float32, -lim1, lim1)
    b1 = jax.random.uniform(k2, (H,), jnp.float32, -lim1, lim1)
    w2 = jax.random.uniform(k3, (H, O), jnp.float32, -lim2, lim2)
    b2 = jax.random.uniform(k4, (O,), jnp.float32, -lim2, lim2)

    out = mlp_pallas(x, w1, b1, w2, b2, approximate_gelu=approximate_gelu)
    out = jax.block_until_ready(out)

    ref = mlp_reference(x, w1, b1, w2, b2, approximate_gelu=approximate_gelu)
    assert out.shape == (B, N, O), out.shape
    # bf16 matmul inputs with f32 accumulation -> loosened tolerance vs f32 ref.
    max_err = float(jnp.max(jnp.abs(out - ref)))
    assert jnp.allclose(out, ref, atol=2e-2, rtol=2e-2), max_err


if __name__ == "__main__":
    key = jax.random.PRNGKey(0)
    k_a, k_b = jax.random.split(key)
    # ViT-Mlp-shaped small case: batch=2, seq=8, in=32, hidden=64 (tanh-GELU path).
    _run_case(k_a, B=2, N=8, C=32, H=64, O=32, approximate_gelu=True)
    # Row count that does not divide the tile (exercises the ragged last block,
    # as with N=197 cls-token sequences); exact-erf GELU (torch default) path.
    _run_case(k_b, B=2, N=5, C=32, H=64, O=32, approximate_gelu=False)

    print("KERNEL_OK")
</pallas_src>

<mosaic_0001>
module attributes {stable_mosaic.version = 11 : i64} {
  func.func @_mlp_kernel(%arg0: i32, %arg1: memref<16x32xf32, #tpu.memory_space<vmem>>, %arg2: memref<32x64xbf16, #tpu.memory_space<vmem>>, %arg3: memref<1x64xf32, #tpu.memory_space<vmem>>, %arg4: memref<64x32xbf16, #tpu.memory_space<vmem>>, %arg5: memref<1x32xf32, #tpu.memory_space<vmem>>, %arg6: memref<16x32xf32, #tpu.memory_space<vmem>>) attributes {dimension_semantics = [#tpu.dimension_semantics<parallel>], iteration_bounds = array<i64: 1>, scalar_prefetch = 0 : i64, scratch_operands = 0 : i64, tpu.core_type = #tpu.core_type<tc>, window_params = [{transform_indices = @transform_0, window_bounds = array<i64: 16, 32>}, {pipeline_mode = #tpu.pipeline_mode<synchronous>, transform_indices = @transform_1, window_bounds = array<i64: 32, 64>}, {pipeline_mode = #tpu.pipeline_mode<synchronous>, transform_indices = @transform_2, window_bounds = array<i64: 1, 64>}, {pipeline_mode = #tpu.pipeline_mode<synchronous>, transform_indices = @transform_3, window_bounds = array<i64: 64, 32>}, {pipeline_mode = #tpu.pipeline_mode<synchronous>, transform_indices = @transform_4, window_bounds = array<i64: 1, 32>}, {transform_indices = @transform_5, window_bounds = array<i64: 16, 32>}]} {
    %c0 = arith.constant 0 : index
    %c0_0 = arith.constant 0 : index
    %0 = vector.load %arg1[%c0, %c0_0] : memref<16x32xf32, #tpu.memory_space<vmem>>, vector<16x32xf32>
    %1 = arith.truncf %0 : vector<16x32xf32> to vector<16x32xbf16>
    %c0_1 = arith.constant 0 : index
    %c0_2 = arith.constant 0 : index
    %2 = vector.load %arg2[%c0_1, %c0_2] : memref<32x64xbf16, #tpu.memory_space<vmem>>, vector<32x64xbf16>
    %cst = arith.constant dense<0.000000e+00> : vector<16x64xf32>
    %3 = tpu.matmul %1, %2, %cst {dimension_numbers = #tpu.dot_dimension_numbers<[1], [0], [0], [1], [0, 0, 1, 1], [], []>} : vector<16x32xbf16>, vector<32x64xbf16>, vector<16x64xf32> -> vector<16x64xf32>
    %c0_3 = arith.constant 0 : index
    %c0_4 = arith.constant 0 : index
    %4 = vector.load %arg3[%c0_3, %c0_4] : memref<1x64xf32, #tpu.memory_space<vmem>>, vector<1x64xf32>
    %5 = vector.broadcast %4 : vector<1x64xf32> to vector<16x64xf32>
    %6 = arith.addf %3, %5 : vector<16x64xf32>
    %7 = arith.mulf %6, %6 : vector<16x64xf32>
    %8 = arith.mulf %6, %7 : vector<16x64xf32>
    %cst_5 = arith.constant 4.471500e-02 : f32
    %9 = vector.broadcast %cst_5 : f32 to vector<16x64xf32>
    %10 = arith.mulf %9, %8 : vector<16x64xf32>
    %11 = arith.addf %6, %10 : vector<16x64xf32>
    %cst_6 = arith.constant 0.797884583 : f32
    %12 = vector.broadcast %cst_6 : f32 to vector<16x64xf32>
    %13 = arith.mulf %12, %11 : vector<16x64xf32>
    %14 = math.tanh %13 : vector<16x64xf32>
    %cst_7 = arith.constant 1.000000e+00 : f32
    %15 = vector.broadcast %cst_7 : f32 to vector<16x64xf32>
    %16 = arith.addf %15, %14 : vector<16x64xf32>
    %cst_8 = arith.constant 5.000000e-01 : f32
    %17 = vector.broadcast %cst_8 : f32 to vector<16x64xf32>
    %18 = arith.mulf %17, %16 : vector<16x64xf32>
    %19 = arith.mulf %6, %18 : vector<16x64xf32>
    %20 = arith.truncf %19 : vector<16x64xf32> to vector<16x64xbf16>
    %c0_9 = arith.constant 0 : index
    %c0_10 = arith.constant 0 : index
    %21 = vector.load %arg4[%c0_9, %c0_10] : memref<64x32xbf16, #tpu.memory_space<vmem>>, vector<64x32xbf16>
    %cst_11 = arith.constant dense<0.000000e+00> : vector<16x32xf32>
    %22 = tpu.matmul %20, %21, %cst_11 {dimension_numbers = #tpu.dot_dimension_numbers<[1], [0], [0], [1], [0, 0, 1, 1], [], []>} : vector<16x64xbf16>, vector<64x32xbf16>, vector<16x32xf32> -> vector<16x32xf32>
    %c0_12 = arith.constant 0 : index
    %c0_13 = arith.constant 0 : index
    %23 = vector.load %arg5[%c0_12, %c0_13] : memref<1x32xf32, #tpu.memory_space<vmem>>, vector<1x32xf32>
    %24 = vector.broadcast %23 : vector<1x32xf32> to vector<16x32xf32>
    %25 = arith.addf %22, %24 : vector<16x32xf32>
    %c0_14 = arith.constant 0 : index
    %c0_15 = arith.constant 0 : index
    %26 = vector.load %arg6[%c0_14, %c0_15] : memref<16x32xf32, #tpu.memory_space<vmem>>, vector<16x32xf32>
    tpu.vector_store %arg6[%c0_14, %c0_15], %25 {strides = array<i32>} : memref<16x32xf32, #tpu.memory_space<vmem>>, vector<16x32xf32>,
    return
  }
  func.func @transform_0(%arg0: i32) -> (i32, i32) {
    %c0_i32 = arith.constant 0 : i32
    %c0_i32_0 = arith.constant 0 : i32
    return %arg0, %c0_i32 : i32, i32
  }
  func.func @transform_1(%arg0: i32) -> (i32, i32) {
    %c0_i32 = arith.constant 0 : i32
    %c0_i32_0 = arith.constant 0 : i32
    %c0_i32_1 = arith.constant 0 : i32
    return %c0_i32, %c0_i32_0 : i32, i32
  }
  func.func @transform_2(%arg0: i32) -> (i32, i32) {
    %c0_i32 = arith.constant 0 : i32
    %c0_i32_0 = arith.constant 0 : i32
    %c0_i32_1 = arith.constant 0 : i32
    return %c0_i32, %c0_i32_0 : i32, i32
  }
  func.func @transform_3(%arg0: i32) -> (i32, i32) {
    %c0_i32 = arith.constant 0 : i32
    %c0_i32_0 = arith.constant 0 : i32
    %c0_i32_1 = arith.constant 0 : i32
    return %c0_i32, %c0_i32_0 : i32, i32
  }
  func.func @transform_4(%arg0: i32) -> (i32, i32) {
    %c0_i32 = arith.constant 0 : i32
    %c0_i32_0 = arith.constant 0 : i32
    %c0_i32_1 = arith.constant 0 : i32
    return %c0_i32, %c0_i32_0 : i32, i32
  }
  func.func @transform_5(%arg0: i32) -> (i32, i32) {
    %c0_i32 = arith.constant 0 : i32
    %c0_i32_0 = arith.constant 0 : i32
    return %arg0, %c0_i32 : i32, i32
  }
}

module attributes {stable_mosaic.version = 11 : i64} {
  func.func @_mlp_kernel(%arg0: i32, %arg1: memref<16x32xf32, #tpu.memory_space<vmem>>, %arg2: memref<32x64xbf16, #tpu.memory_space<vmem>>, %arg3: memref<1x64xf32, #tpu.memory_space<vmem>>, %arg4: memref<64x32xbf16, #tpu.memory_space<vmem>>, %arg5: memref<1x32xf32, #tpu.memory_space<vmem>>, %arg6: memref<16x32xf32, #tpu.memory_space<vmem>>) attributes {dimension_semantics = [#tpu.dimension_semantics<parallel>], iteration_bounds = array<i64: 1>, scalar_prefetch = 0 : i64, scratch_operands = 0 : i64, tpu.core_type = #tpu.core_type<tc>, window_params = [{transform_indices = @transform_0, window_bounds = array<i64: 16, 32>}, {pipeline_mode = #tpu.pipeline_mode<synchronous>, transform_indices = @transform_1, window_bounds = array<i64: 32, 64>}, {pipeline_mode = #tpu.pipeline_mode<synchronous>, transform_indices = @transform_2, window_bounds = array<i64: 1, 64>}, {pipeline_mode = #tpu.pipeline_mode<synchronous>, transform_indices = @transform_3, window_bounds = array<i64: 64, 32>}, {pipeline_mode = #tpu.pipeline_mode<synchronous>, transform_indices = @transform_4, window_bounds = array<i64: 1, 32>}, {transform_indices = @transform_5, window_bounds = array<i64: 16, 32>}]} {
    %c0 = arith.constant 0 : index
    %c0_0 = arith.constant 0 : index
    %0 = vector.load %arg1[%c0, %c0_0] : memref<16x32xf32, #tpu.memory_space<vmem>>, vector<16x32xf32>
    %1 = arith.truncf %0 : vector<16x32xf32> to vector<16x32xbf16>
    %c0_1 = arith.constant 0 : index
    %c0_2 = arith.constant 0 : index
    %2 = vector.load %arg2[%c0_1, %c0_2] : memref<32x64xbf16, #tpu.memory_space<vmem>>, vector<32x64xbf16>
    %cst = arith.constant dense<0.000000e+00> : vector<16x64xf32>
    %3 = tpu.matmul %1, %2, %cst {dimension_numbers = #tpu.dot_dimension_numbers<[1], [0], [0], [1], [0, 0, 1, 1], [], []>} : vector<16x32xbf16>, vector<32x64xbf16>, vector<16x64xf32> -> vector<16x64xf32>
    %c0_3 = arith.constant 0 : index
    %c0_4 = arith.constant 0 : index
    %4 = vector.load %arg3[%c0_3, %c0_4] : memref<1x64xf32, #tpu.memory_space<vmem>>, vector<1x64xf32>
    %5 = vector.broadcast %4 : vector<1x64xf32> to vector<16x64xf32>
    %6 = arith.addf %3, %5 : vector<16x64xf32>
    %7 = arith.mulf %6, %6 : vector<16x64xf32>
    %8 = arith.mulf %6, %7 : vector<16x64xf32>
    %cst_5 = arith.constant 4.471500e-02 : f32
    %9 = vector.broadcast %cst_5 : f32 to vector<16x64xf32>
    %10 = arith.mulf %9, %8 : vector<16x64xf32>
    %11 = arith.addf %6, %10 : vector<16x64xf32>
    %cst_6 = arith.constant 0.797884583 : f32
    %12 = vector.broadcast %cst_6 : f32 to vector<16x64xf32>
    %13 = arith.mulf %12, %11 : vector<16x64xf32>
    %14 = math.tanh %13 : vector<16x64xf32>
    %cst_7 = arith.constant 1.000000e+00 : f32
    %15 = vector.broadcast %cst_7 : f32 to vector<16x64xf32>
    %16 = arith.addf %15, %14 : vector<16x64xf32>
    %cst_8 = arith.constant 5.000000e-01 : f32
    %17 = vector.broadcast %cst_8 : f32 to vector<16x64xf32>
    %18 = arith.mulf %17, %16 : vector<16x64xf32>
    %19 = arith.mulf %6, %18 : vector<16x64xf32>
    %20 = arith.truncf %19 : vector<16x64xf32> to vector<16x64xbf16>
    %c0_9 = arith.constant 0 : index
    %c0_10 = arith.constant 0 : index
    %21 = vector.load %arg4[%c0_9, %c0_10] : memref<64x32xbf16, #tpu.memory_space<vmem>>, vector<64x32xbf16>
    %cst_11 = arith.constant dense<0.000000e+00> : vector<16x32xf32>
    %22 = tpu.matmul %20, %21, %cst_11 {dimension_numbers = #tpu.dot_dimension_numbers<[1], [0], [0], [1], [0, 0, 1, 1], [], []>} : vector<16x64xbf16>, vector<64x32xbf16>, vector<16x32xf32> -> vector<16x32xf32>
    %c0_12 = arith.constant 0 : index
    %c0_13 = arith.constant 0 : index
    %23 = vector.load %arg5[%c0_12, %c0_13] : memref<1x32xf32, #tpu.memory_space<vmem>>, vector<1x32xf32>
    %24 = vector.broadcast %23 : vector<1x32xf32> to vector<16x32xf32>
    %25 = arith.addf %22, %24 : vector<16x32xf32>
    %c0_14 = arith.constant 0 : index
    %c0_15 = arith.constant 0 : index
    %26 = vector.load %arg6[%c0_14, %c0_15] : memref<16x32xf32, #tpu.memory_space<vmem>>, vector<16x32xf32>
    tpu.vector_store %arg6[%c0_14, %c0_15], %25 {strides = array<i32>} : memref<16x32xf32, #tpu.memory_space<vmem>>, vector<16x32xf32>,
    return
  }
  func.func @transform_0(%arg0: i32) -> (i32, i32) {
    %c0_i32 = arith.constant 0 : i32
    %c0_i32_0 = arith.constant 0 : i32
    return %arg0, %c0_i32 : i32, i32
  }
  func.func @transform_1(%arg0: i32) -> (i32, i32) {
    %c0_i32 = arith.constant 0 : i32
    %c0_i32_0 = arith.constant 0 : i32
    %c0_i32_1 = arith.constant 0 : i32
    return %c0_i32, %c0_i32_0 : i32, i32
  }
  func.func @transform_2(%arg0: i32) -> (i32, i32) {
    %c0_i32 = arith.constant 0 : i32
    %c0_i32_0 = arith.constant 0 : i32
    %c0_i32_1 = arith.constant 0 : i32
    return %c0_i32, %c0_i32_0 : i32, i32
  }
  func.func @transform_3(%arg0: i32) -> (i32, i32) {
    %c0_i32 = arith.constant 0 : i32
    %c0_i32_0 = arith.constant 0 : i32
    %c0_i32_1 = arith.constant 0 : i32
    return %c0_i32, %c0_i32_0 : i32, i32
  }
  func.func @transform_4(%arg0: i32) -> (i32, i32) {
    %c0_i32 = arith.constant 0 : i32
    %c0_i32_0 = arith.constant 0 : i32
    %c0_i32_1 = arith.constant 0 : i32
    return %c0_i32, %c0_i32_0 : i32, i32
  }
  func.func @transform_5(%arg0: i32) -> (i32, i32) {
    %c0_i32 = arith.constant 0 : i32
    %c0_i32_0 = arith.constant 0 : i32
    return %arg0, %c0_i32 : i32, i32
  }
}

</mosaic_0001>

<llo_original>
// kernel: tpu_custom_call.1
$region0: #{tpu_custom_call.1}
  #allocation0 [shape = 'u32[]', space=smem, size = 0x4, offset = 0x4, fixed_abs, tag = 'smem constant byte address 0x4 - core index']
  #allocation1 [shape = 'u32[72,128]{1,0:T(1,128)}', space=vmem, size = 0x9000, scoped, tag = 'internal scratch']
  %s0 = inlined_call_operand.vmem [shape: f32[16,32], index: 0, kind: input, shape index: {}]
  %s1 = inlined_call_operand.vmem [shape: bf16[32,64], index: 1, kind: input, shape index: {}]
  %s2 = inlined_call_operand.vmem [shape: f32[1,64], index: 2, kind: input, shape index: {}]
  %s3 = inlined_call_operand.vmem [shape: bf16[64,32], index: 3, kind: input, shape index: {}]
  %s4 = inlined_call_operand.vmem [shape: f32[1,32], index: 4, kind: input, shape index: {}]
  %s5 = inlined_call_operand.hbm [shape: f32[16,32], index: 5, kind: output, shape index: {}]
  %s6 = sld [smem:[#allocation0]]
  $region30: #{tpu_custom_call.1} parent=0
    _
  %s8 = ssub.s32 1, %s6
  %s9 = scalar_select 0, %s8, %s6
  $region1: #{tpu_custom_call.1} parent=0
    #allocation2 [shape = 'u8[8192]{0}', space=vmem, size = 0x2000, scoped, tag = 'output window, operand 0, single buffered']
    #allocation3 [shape = 's32[1]{0}', space=sflag, size = 0x4, scoped, tag = 'scoped memory for tpu_custom_call.1']
    %10 = vsyncpa [#allocation3], 0
    // Predicated region
    $region2: #{tpu_custom_call.1} parent=1 // pred_check
      _
    $region3: #{tpu_custom_call.1} parent=1 // pred_check_branch
      %12 = sbr.rel (0) target = $region5
    $region4: #{tpu_custom_call.1} parent=1 // pred_region
      _
    $region5: #{tpu_custom_call.1} parent=1 // pred_fallthru
      _
    // Predicated region
    $region6: #{tpu_custom_call.1} parent=1 // pred_check
      _
    $region7: #{tpu_custom_call.1} parent=1 // pred_check_branch
      %14 = sbr.rel (0) target = $region9
    $region8: #{tpu_custom_call.1} parent=1 // pred_region
      _
    $region9: #{tpu_custom_call.1} parent=1 // pred_fallthru
      _
    // Predicated region
    $region10: #{tpu_custom_call.1} parent=1 // pred_check
      _
    $region11: #{tpu_custom_call.1} parent=1 // pred_check_branch
      %16 = sbr.rel (0) target = $region13
    $region12: #{tpu_custom_call.1} parent=1 // pred_region
      _
    $region13: #{tpu_custom_call.1} parent=1 // pred_fallthru
      _
    // Predicated region
    $region14: #{tpu_custom_call.1} parent=1 // pred_check
      _
    $region15: #{tpu_custom_call.1} parent=1 // pred_check_branch
      %18 = sbr.rel (0) target = $region17
    $region16: #{tpu_custom_call.1} parent=1 // pred_region
      _
    $region17: #{tpu_custom_call.1} parent=1 // pred_fallthru
      _
    // Predicated region
    $region18: #{tpu_custom_call.1} parent=1 // pred_check
      _
    $region19: #{tpu_custom_call.1} parent=1 // pred_check_branch
      %20 = sbr.rel (0) target = $region21
    $region20: #{tpu_custom_call.1} parent=1 // pred_region
      _
    $region21: #{tpu_custom_call.1} parent=1 // pred_fallthru
      _
    %v22 = vld [vmem:[%s0] sm:$0xff]
    %v23 = vld [vmem:[%s0 + $0x8] sm:$0xff]
    %v24 = vpack.c.bf16 %v23, %v22
    %v25 = vld [vmem:[%s1] sm:$0xf]
    %v26 = vld [vmem:[%s1 + $0x4] sm:$0xf]
    %v27 = vld [vmem:[%s1 + $0x8] sm:$0xf]
    %v28 = vld [vmem:[%s1 + $0xc] sm:$0xf]
    %v29 = vld [vmem:[%s2] sm:$0x1]
    %v31 = vperm.slane %v29, 0
    %v37 = vunpack.c.l.b16 %v25
    %v38 = vunpack.c.l.b16 %v26
    %v39 = vunpack.c.l.b16 %v27
    %v40 = vunpack.c.l.b16 %v28
    %v41 = vpack.c.b16 %v38, %v37
    %v42 = vpack.c.b16 %v40, %v39
    %vm45 = vcmask 261120
    %v47 = vsel %vm45, %v24, 0
    %49 = vmatpush.bf16.msra.mxu0 0
    %50 = vmatpush.bf16.msra.mxu0 0
    %51 = vmatpush.bf16.msra.mxu0 0
    %52 = vmatpush.bf16.msra.mxu0 0
    %53 = vmatpush.bf16.msra.mxu0 0
    %54 = vmatpush.bf16.msra.mxu0 0
    %55 = vmatpush.bf16.msra.mxu0 %v42
    %56 = vmatpush.bf16.msra.mxu0 %v41
    %57 = vmatmul.bf16.gmra.mxu0 %v47
    %v58 = vpop.f32.mrf.mxu0
    %v59 = vadd.f32 %v31, %v58
    %v60 = vpop.f32.mrf.mxu0
    %v61 = vadd.f32 %v31, %v60
    %62 = vdwg.mxu0
    %v63 = vmul.f32 %v59, %v59
    %v64 = vmul.f32 %v61, %v61
    %v65 = vmul.f32 %v59, %v63
    %v66 = vmul.f32 %v61, %v64
    %v67 = vmul.f32 %v65, 0.044715
    %v68 = vmul.f32 %v66, 0.044715
    %v69 = vadd.f32 %v59, %v67
    %v70 = vadd.f32 %v61, %v68
    %v71 = vmul.f32 %v69, 0.7978846
    %v72 = vmul.f32 %v70, 0.7978846
    %v73 = vtanh.pop %v71
    %v74 = vtanh.pop %v72
    %v75 = vadd.f32 %v73, 1.0
    %v76 = vadd.f32 %v74, 1.0
    %v77 = vmul.f32 %v75, 0.5
    %v78 = vmul.f32 %v76, 0.5
    %v79 = vmul.f32 %v59, %v77
    %v80 = vmul.f32 %v61, %v78
    %v81 = vpack.c.bf16 %v80, %v79
    %v82 = vld [vmem:[%s3] sm:$0xf]
    %v83 = vld [vmem:[%s3 + $0x4] sm:$0xf]
    %v84 = vld [vmem:[%s3 + $0x8] sm:$0xf]
    %v85 = vld [vmem:[%s3 + $0xc] sm:$0xf]
    %v86 = vld [vmem:[%s3 + $0x10] sm:$0xf]
    %v87 = vld [vmem:[%s3 + $0x14] sm:$0xf]
    %v88 = vld [vmem:[%s3 + $0x18] sm:$0xf]
    %v89 = vld [vmem:[%s3 + $0x1c] sm:$0xf]
    %v90 = vld [vmem:[%s4] sm:$0x1]
    %v92 = vperm.slane %v90, 0
    %v102 = vunpack.c.l.b16 %v82
    %v103 = vunpack.c.l.b16 %v83
    %v104 = vunpack.c.l.b16 %v84
    %v105 = vunpack.c.l.b16 %v85
    %v106 = vunpack.c.l.b16 %v86
    %v107 = vunpack.c.l.b16 %v87
    %v108 = vunpack.c.l.b16 %v88
    %v109 = vunpack.c.l.b16 %v89
    %v110 = vpack.c.b16 %v103, %v102
    %v111 = vpack.c.b16 %v105, %v104
    %v112 = vpack.c.b16 %v107, %v106
    %v113 = vpack.c.b16 %v109, %v108
    %vm118 = vcmask 523264
    %v120 = vsel %vm118, %v81, 0
    %122 = vmatpush.bf16.msra.mxu0 0
    %123 = vmatpush.bf16.msra.mxu0 0
    %124 = vmatpush.bf16.msra.mxu0 0
    %125 = vmatpush.bf16.msra.mxu0 0
    %126 = vmatpush.bf16.msra.mxu0 %v113
    %127 = vmatpush.bf16.msra.mxu0 %v112
    %128 = vmatpush.bf16.msra.mxu0 %v111
    %129 = vmatpush.bf16.msra.mxu0 %v110
    %130 = vmatmul.bf16.gmra.mxu0 %v120
    %v131 = vpop.f32.mrf.mxu0
    %v132 = vadd.f32 %v92, %v131
    %v133 = vpop.f32.mrf.mxu0
    %v134 = vadd.f32 %v92, %v133
    %135 = vdwg.mxu0
    %136 = vst.msk [vmem:[#allocation2] sm:$0xff] %vm45, %v132
    %137 = vst.msk [vmem:[#allocation2 + $0x8] sm:$0xff] %vm45, %v134
    // Predicated region
    $region22: #{tpu_custom_call.1} parent=1 // pred_check
      _
    $region23: #{tpu_custom_call.1} parent=1 // pred_check_branch
      %139 = sbr.rel (0) target = $region25
    $region24: #{tpu_custom_call.1} parent=1 // pred_region
      %141 = vsyncadd [#allocation3], 0
      %s142 = sshll.u32 [#allocation2], 4
      %s143 = int_to_ptr.vmem [resolvable:$true] %s142
      %s144 = sshll.u32 %s5, 4
      %s145 = int_to_ptr.hbm [resolvable:$true] %s144
      %150 = dma.vmem_to_hbm [thread:$0]  %s143, 256, %s145, [#allocation3], 128, 128, 8
    $region25: #{tpu_custom_call.1} parent=1 // pred_fallthru
      _
    // Predicated region
    $region26: #{tpu_custom_call.1} parent=1 // pred_check
      _
    $region27: #{tpu_custom_call.1} parent=1 // pred_check_branch
      %152 = sbr.rel (0) target = $region29
    $region28: #{tpu_custom_call.1} parent=1 // pred_region
      %154 = dma.done [#allocation3], 256
    $region29: #{tpu_custom_call.1} parent=1 // pred_fallthru
      _
    %155 = vsyncpa [#allocation3], 1

// kernel: tpu_custom_call.1
$region0: #{tpu_custom_call.1}
  #allocation0 [shape = 'u32[]', space=smem, size = 0x4, offset = 0x4, fixed_abs, tag = 'smem constant byte address 0x4 - core index']
  #allocation1 [shape = 'u32[72,128]{1,0:T(1,128)}', space=vmem, size = 0x9000, scoped, tag = 'internal scratch']
  %s0 = inlined_call_operand.vmem [shape: f32[16,32], index: 0, kind: input, shape index: {}]
  %s1 = inlined_call_operand.vmem [shape: bf16[32,64], index: 1, kind: input, shape index: {}]
  %s2 = inlined_call_operand.vmem [shape: f32[1,64], index: 2, kind: input, shape index: {}]
  %s3 = inlined_call_operand.vmem [shape: bf16[64,32], index: 3, kind: input, shape index: {}]
  %s4 = inlined_call_operand.vmem [shape: f32[1,32], index: 4, kind: input, shape index: {}]
  %s5 = inlined_call_operand.hbm [shape: f32[16,32], index: 5, kind: output, shape index: {}]
  %s6 = sld [smem:[#allocation0]]
  $region30: #{tpu_custom_call.1} parent=0
    _
  %s8 = ssub.s32 1, %s6
  %s9 = scalar_select 0, %s8, %s6
  $region1: #{tpu_custom_call.1} parent=0
    #allocation2 [shape = 'u8[8192]{0}', space=vmem, size = 0x2000, scoped, tag = 'output window, operand 0, single buffered']
    #allocation3 [shape = 's32[1]{0}', space=sflag, size = 0x4, scoped, tag = 'scoped memory for tpu_custom_call.1']
    %10 = vsyncpa [#allocation3], 0
    // Predicated region
    $region2: #{tpu_custom_call.1} parent=1 // pred_check
      _
    $region3: #{tpu_custom_call.1} parent=1 // pred_check_branch
      %12 = sbr.rel (0) target = $region5
    $region4: #{tpu_custom_call.1} parent=1 // pred_region
      _
    $region5: #{tpu_custom_call.1} parent=1 // pred_fallthru
      _
    // Predicated region
    $region6: #{tpu_custom_call.1} parent=1 // pred_check
      _
    $region7: #{tpu_custom_call.1} parent=1 // pred_check_branch
      %14 = sbr.rel (0) target = $region9
    $region8: #{tpu_custom_call.1} parent=1 // pred_region
      _
    $region9: #{tpu_custom_call.1} parent=1 // pred_fallthru
      _
    // Predicated region
    $region10: #{tpu_custom_call.1} parent=1 // pred_check
      _
    $region11: #{tpu_custom_call.1} parent=1 // pred_check_branch
      %16 = sbr.rel (0) target = $region13
    $region12: #{tpu_custom_call.1} parent=1 // pred_region
      _
    $region13: #{tpu_custom_call.1} parent=1 // pred_fallthru
      _
    // Predicated region
    $region14: #{tpu_custom_call.1} parent=1 // pred_check
      _
    $region15: #{tpu_custom_call.1} parent=1 // pred_check_branch
      %18 = sbr.rel (0) target = $region17
    $region16: #{tpu_custom_call.1} parent=1 // pred_region
      _
    $region17: #{tpu_custom_call.1} parent=1 // pred_fallthru
      _
    // Predicated region
    $region18: #{tpu_custom_call.1} parent=1 // pred_check
      _
    $region19: #{tpu_custom_call.1} parent=1 // pred_check_branch
      %20 = sbr.rel (0) target = $region21
    $region20: #{tpu_custom_call.1} parent=1 // pred_region
      _
    $region21: #{tpu_custom_call.1} parent=1 // pred_fallthru
      _
    %v22 = vld [vmem:[%s0] sm:$0xff]
    %v23 = vld [vmem:[%s0 + $0x8] sm:$0xff]
    %v24 = vpack.c.bf16 %v23, %v22
    %v25 = vld [vmem:[%s1] sm:$0xf]
    %v26 = vld [vmem:[%s1 + $0x4] sm:$0xf]
    %v27 = vld [vmem:[%s1 + $0x8] sm:$0xf]
    %v28 = vld [vmem:[%s1 + $0xc] sm:$0xf]
    %v29 = vld [vmem:[%s2] sm:$0x1]
    %v31 = vperm.slane %v29, 0
    %v37 = vunpack.c.l.b16 %v25
    %v38 = vunpack.c.l.b16 %v26
    %v39 = vunpack.c.l.b16 %v27
    %v40 = vunpack.c.l.b16 %v28
    %v41 = vpack.c.b16 %v38, %v37
    %v42 = vpack.c.b16 %v40, %v39
    %vm45 = vcmask 261120
    %v47 = vsel %vm45, %v24, 0
    %49 = vmatpush.bf16.msra.mxu0 0
    %50 = vmatpush.bf16.msra.mxu0 0
    %51 = vmatpush.bf16.msra.mxu0 0
    %52 = vmatpush.bf16.msra.mxu0 0
    %53 = vmatpush.bf16.msra.mxu0 0
    %54 = vmatpush.bf16.msra.mxu0 0
    %55 = vmatpush.bf16.msra.mxu0 %v42
    %56 = vmatpush.bf16.msra.mxu0 %v41
    %57 = vmatmul.bf16.gmra.mxu0 %v47
    %v58 = vpop.f32.mrf.mxu0
    %v59 = vadd.f32 %v31, %v58
    %v60 = vpop.f32.mrf.mxu0
    %v61 = vadd.f32 %v31, %v60
    %62 = vdwg.mxu0
    %v63 = vmul.f32 %v59, %v59
    %v64 = vmul.f32 %v61, %v61
    %v65 = vmul.f32 %v59, %v63
    %v66 = vmul.f32 %v61, %v64
    %v67 = vmul.f32 %v65, 0.044715
    %v68 = vmul.f32 %v66, 0.044715
    %v69 = vadd.f32 %v59, %v67
    %v70 = vadd.f32 %v61, %v68
    %v71 = vmul.f32 %v69, 0.7978846
    %v72 = vmul.f32 %v70, 0.7978846
    %v73 = vtanh.pop %v71
    %v74 = vtanh.pop %v72
    %v75 = vadd.f32 %v73, 1.0
    %v76 = vadd.f32 %v74, 1.0
    %v77 = vmul.f32 %v75, 0.5
    %v78 = vmul.f32 %v76, 0.5
    %v79 = vmul.f32 %v59, %v77
    %v80 = vmul.f32 %v61, %v78
    %v81 = vpack.c.bf16 %v80, %v79
    %v82 = vld [vmem:[%s3] sm:$0xf]
    %v83 = vld [vmem:[%s3 + $0x4] sm:$0xf]
    %v84 = vld [vmem:[%s3 + $0x8] sm:$0xf]
    %v85 = vld [vmem:[%s3 + $0xc] sm:$0xf]
    %v86 = vld [vmem:[%s3 + $0x10] sm:$0xf]
    %v87 = vld [vmem:[%s3 + $0x14] sm:$0xf]
    %v88 = vld [vmem:[%s3 + $0x18] sm:$0xf]
    %v89 = vld [vmem:[%s3 + $0x1c] sm:$0xf]
    %v90 = vld [vmem:[%s4] sm:$0x1]
    %v92 = vperm.slane %v90, 0
    %v102 = vunpack.c.l.b16 %v82
    %v103 = vunpack.c.l.b16 %v83
    %v104 = vunpack.c.l.b16 %v84
    %v105 = vunpack.c.l.b16 %v85
    %v106 = vunpack.c.l.b16 %v86
    %v107 = vunpack.c.l.b16 %v87
    %v108 = vunpack.c.l.b16 %v88
    %v109 = vunpack.c.l.b16 %v89
    %v110 = vpack.c.b16 %v103, %v102
    %v111 = vpack.c.b16 %v105, %v104
    %v112 = vpack.c.b16 %v107, %v106
    %v113 = vpack.c.b16 %v109, %v108
    %vm118 = vcmask 523264
    %v120 = vsel %vm118, %v81, 0
    %122 = vmatpush.bf16.msra.mxu0 0
    %123 = vmatpush.bf16.msra.mxu0 0
    %124 = vmatpush.bf16.msra.mxu0 0
    %125 = vmatpush.bf16.msra.mxu0 0
    %126 = vmatpush.bf16.msra.mxu0 %v113
    %127 = vmatpush.bf16.msra.mxu0 %v112
    %128 = vmatpush.bf16.msra.mxu0 %v111
    %129 = vmatpush.bf16.msra.mxu0 %v110
    %130 = vmatmul.bf16.gmra.mxu0 %v120
    %v131 = vpop.f32.mrf.mxu0
    %v132 = vadd.f32 %v92, %v131
    %v133 = vpop.f32.mrf.mxu0
    %v134 = vadd.f32 %v92, %v133
    %135 = vdwg.mxu0
    %136 = vst.msk [vmem:[#allocation2] sm:$0xff] %vm45, %v132
    %137 = vst.msk [vmem:[#allocation2 + $0x8] sm:$0xff] %vm45, %v134
    // Predicated region
    $region22: #{tpu_custom_call.1} parent=1 // pred_check
      _
    $region23: #{tpu_custom_call.1} parent=1 // pred_check_branch
      %139 = sbr.rel (0) target = $region25
    $region24: #{tpu_custom_call.1} parent=1 // pred_region
      %141 = vsyncadd [#allocation3], 0
      %s142 = sshll.u32 [#allocation2], 4
      %s143 = int_to_ptr.vmem [resolvable:$true] %s142
      %s144 = sshll.u32 %s5, 4
      %s145 = int_to_ptr.hbm [resolvable:$true] %s144
      %150 = dma.vmem_to_hbm [thread:$0]  %s143, 256, %s145, [#allocation3], 128, 128, 8
    $region25: #{tpu_custom_call.1} parent=1 // pred_fallthru
      _
    // Predicated region
    $region26: #{tpu_custom_call.1} parent=1 // pred_check
      _
    $region27: #{tpu_custom_call.1} parent=1 // pred_check_branch
      %152 = sbr.rel (0) target = $region29
    $region28: #{tpu_custom_call.1} parent=1 // pred_region
      %154 = dma.done [#allocation3], 256
    $region29: #{tpu_custom_call.1} parent=1 // pred_fallthru
      _
    %155 = vsyncpa [#allocation3], 1

</llo_original>
